<compile_context>
chip_gen: v5e
topology: v5e:2x2
jax: 0.10.0
libtpu: 0.0.40
codegen_flags: <defaults>
</compile_context>

<pallas_src>
import functools
import math

import jax
import jax.numpy as jnp
import numpy as np
from jax.experimental import pallas as pl
from jax.experimental.pallas import tpu as pltpu

_VMEM_LIMIT = 48 * 1024 * 1024  # > 32 MiB scoped default, < 64 MiB v7x physical


def _pick_tile(dim, cap, align):
    """Largest tile <= cap that divides dim and is a multiple of `align`,
    falling back to the full dim (full dims always satisfy the block rule)."""
    if dim <= cap:
        return dim
    t = cap - cap % align
    while t >= align:
        if dim % t == 0:
            return t
        t -= align
    # TODO(synk): pad-and-mask path for awkward dims with no aligned divisor;
    # the full-dim fallback is correct but the VMEM asserts below guard it.
    return dim


# ----------------------------- tiled linear --------------------------------

def _linear_kernel(x_ref, w_ref, b_ref, o_ref, acc_ref):
    k = pl.program_id(2)

    @pl.when(k == 0)
    def _init():
        acc_ref[...] = jnp.zeros(acc_ref.shape, jnp.float32)

    acc_ref[...] += jnp.dot(x_ref[...], w_ref[...],
                            preferred_element_type=jnp.float32)

    @pl.when(k == pl.num_programs(2) - 1)
    def _store():
        # bias is kept/added in f32, single cast to the output dtype.
        o_ref[...] = (acc_ref[...] + b_ref[...]).astype(o_ref.dtype)


def linear(x, w, b, *, tm_cap=256, tn_cap=512, tk_cap=512):
    """x: (..., Din) bf16, w: (Din, Dout) bf16, b: (Dout,) f32 -> (..., Dout)."""
    lead = x.shape[:-1]
    Din = x.shape[-1]
    Dout = w.shape[1]
    M = int(np.prod(lead))
    x2 = x.reshape(M, Din)          # free reshape (collapse leading dims)
    b2 = b.reshape(1, Dout).astype(jnp.float32)

    tm = _pick_tile(M, tm_cap, 16)     # bf16 sublane packing -> align 16
    tn = _pick_tile(Dout, tn_cap, 128)
    tk = _pick_tile(Din, tk_cap, 128)

    isz = x2.dtype.itemsize
    wsz = w.dtype.itemsize
    est = (2 * (tm * tk * isz + tk * tn * wsz + tn * 4)   # double-buffered ins
           + 2 * tm * tn * isz                            # double-buffered out
           + tm * tn * 4)                                 # f32 accumulator
    assert est <= _VMEM_LIMIT, f"linear tiling needs ~{est} B VMEM"

    out = pl.pallas_call(
        _linear_kernel,
        out_shape=jax.ShapeDtypeStruct((M, Dout), x.dtype),
        grid_spec=pltpu.PrefetchScalarGridSpec(
            num_scalar_prefetch=0,
            grid=(M // tm, Dout // tn, Din // tk),
            in_specs=[
                pl.BlockSpec((tm, tk), lambda i, j, k: (i, k)),
                pl.BlockSpec((tk, tn), lambda i, j, k: (k, j)),
                pl.BlockSpec((1, tn), lambda i, j, k: (0, j)),
            ],
            out_specs=pl.BlockSpec((tm, tn), lambda i, j, k: (i, j)),
            scratch_shapes=[pltpu.VMEM((tm, tn), jnp.float32)],
        ),
        compiler_params=pltpu.CompilerParams(
            dimension_semantics=("parallel", "parallel", "arbitrary"),
            vmem_limit_bytes=_VMEM_LIMIT),
    )(x2, w, b2)
    return out.reshape(*lead, Dout)


# ------------------------ causal GQA flash attention ------------------------

def _gqa_flash_kernel(qi_ref, ki_ref, q_ref, k_ref, v_ref, o_ref,
                      qs_ref, m_ref, l_ref, acc_ref, *,
                      softmax_scale, n_heads, kv_n_heads, head_dim, tq, tkv):
    pair = pl.program_id(1)
    qi = qi_ref[pair]
    ki = ki_ref[pair]
    group = n_heads // kv_n_heads
    hd = head_dim
    gq = group * tq

    @pl.when(ki == 0)
    def _init():
        # Stage scaled q once per q block: (tq, H*hd) -> (KVH, group*tq, hd),
        # folding the GQA group into M.  Scale applied in f32 math, a single
        # rounding to bf16 (negligible vs bf16 matmul noise).
        q_all = q_ref[0]
        for g in range(kv_n_heads):
            for j in range(group):
                h = g * group + j
                q_h = q_all[:, h * hd:(h + 1) * hd].astype(jnp.float32)
                qs_ref[g, j * tq:(j + 1) * tq, :] = (
                    q_h * softmax_scale).astype(qs_ref.dtype)
        m_ref[...] = jnp.full(m_ref.shape, -1e30, jnp.float32)
        l_ref[...] = jnp.zeros(l_ref.shape, jnp.float32)
        acc_ref[...] = jnp.zeros(acc_ref.shape, jnp.float32)

    def step(masked):
        if masked:
            rows = qi * tq + (
                jax.lax.broadcasted_iota(jnp.int32, (gq, tkv), 0) % tq)
            cols = ki * tkv + jax.lax.broadcasted_iota(jnp.int32, (gq, tkv), 1)
            keep = rows >= cols                    # shared across KV heads
        k_all = k_ref[0]                           # (tkv, KVH*hd) bf16
        v_all = v_ref[0]
        for g in range(kv_n_heads):                # one big matmul per KV head
            k_g = k_all[:, g * hd:(g + 1) * hd]    # (tkv, hd)
            v_g = v_all[:, g * hd:(g + 1) * hd]
            q_g = qs_ref[g]                        # (group*tq, hd) bf16, scaled
            s = jax.lax.dot_general(q_g, k_g, (((1,), (1,)), ((), ())),
                                    preferred_element_type=jnp.float32)
            if masked:
                s = jnp.where(keep, s, -1e30)      # f32 fill (bf16-safe)
            m_prev = m_ref[g]                      # (group*tq, 1) f32
            l_prev = l_ref[g]
            m_new = jnp.maximum(m_prev, jnp.max(s, axis=-1, keepdims=True))
            alpha = jnp.exp(m_prev - m_new)
            prob = jnp.exp(s - m_new)              # f32 softmax stats
            l_ref[g] = alpha * l_prev + jnp.sum(prob, axis=-1, keepdims=True)
            m_ref[g] = m_new
            pv = jax.lax.dot_general(prob.astype(v_g.dtype), v_g,
                                     (((1,), (0,)), ((), ())),
                                     preferred_element_type=jnp.float32)
            acc_ref[g] = alpha * acc_ref[g] + pv

    # Blocks strictly below the diagonal skip mask construction entirely.
    full = (ki * tkv + (tkv - 1)) <= (qi * tq)

    @pl.when(full)
    def _unmasked():
        step(masked=False)

    @pl.when(jnp.logical_not(full))
    def _masked():
        step(masked=True)

    last_ki = (qi * tq + (tq - 1)) // tkv

    @pl.when(ki == last_ki)
    def _finalize():
        for g in range(kv_n_heads):
            inv_l = pl.reciprocal(l_ref[g], approx=True)   # EUP
            ctx = acc_ref[g] * inv_l                        # (group*tq, hd) f32
            for j in range(group):
                h = g * group + j
                o_ref[0, :, h * hd:(h + 1) * hd] = (
                    ctx[j * tq:(j + 1) * tq, :]).astype(o_ref.dtype)


def gqa_flash_attention(q, k, v, n_heads, kv_n_heads, head_dim, softmax_scale,
                        *, tq_cap=256, tkv_cap=256):
    """q: (B, S, H*hd), k/v: (B, S, KVH*hd) bf16 -> (B, S, H*hd). Causal."""
    B, S, qd = q.shape
    kd = k.shape[-1]
    assert qd == n_heads * head_dim and kd == kv_n_heads * head_dim
    group = n_heads // kv_n_heads

    tq = _pick_tile(S, tq_cap, 16)     # bf16 sublane packing -> align 16
    tkv = _pick_tile(S, tkv_cap, 16)
    nq = S // tq

    # Flatten (qi, ki) onto a 1-D grid over only lower-triangular block pairs:
    # no grid steps are wasted on fully-masked kv blocks.
    qi_list, ki_list = [], []
    for qi in range(nq):
        last = (qi * tq + tq - 1) // tkv
        for ki in range(last + 1):
            qi_list.append(qi)
            ki_list.append(ki)
    qi_ids = jnp.asarray(qi_list, dtype=jnp.int32)
    ki_ids = jnp.asarray(ki_list, dtype=jnp.int32)
    n_pairs = len(qi_list)

    isz = q.dtype.itemsize
    est = (2 * (tq * qd * isz + 2 * tkv * kd * isz)        # double-buffered ins
           + 2 * tq * qd * isz                             # double-buffered out
           + kv_n_heads * group * tq * head_dim * (isz + 4)   # q stage + acc
           + 2 * kv_n_heads * group * tq * 128 * 4)        # m/l (lane-padded)
    assert est <= _VMEM_LIMIT, f"attention tiling needs ~{est} B VMEM"

    kernel = functools.partial(
        _gqa_flash_kernel, softmax_scale=float(softmax_scale),
        n_heads=n_heads, kv_n_heads=kv_n_heads, head_dim=head_dim,
        tq=tq, tkv=tkv)

    return pl.pallas_call(
        kernel,
        out_shape=jax.ShapeDtypeStruct((B, S, qd), q.dtype),
        grid_spec=pltpu.PrefetchScalarGridSpec(
            num_scalar_prefetch=2,
            grid=(B, n_pairs),
            in_specs=[
                pl.BlockSpec((1, tq, qd),
                             lambda b, p, qi, ki: (b, qi[p], 0)),
                pl.BlockSpec((1, tkv, kd),
                             lambda b, p, qi, ki: (b, ki[p], 0)),
                pl.BlockSpec((1, tkv, kd),
                             lambda b, p, qi, ki: (b, ki[p], 0)),
            ],
            out_specs=pl.BlockSpec((1, tq, qd),
                                   lambda b, p, qi, ki: (b, qi[p], 0)),
            scratch_shapes=[
                pltpu.VMEM((kv_n_heads, group * tq, head_dim), q.dtype),  # q
                pltpu.VMEM((kv_n_heads, group * tq, 1), jnp.float32),     # m
                pltpu.VMEM((kv_n_heads, group * tq, 1), jnp.float32),     # l
                pltpu.VMEM((kv_n_heads, group * tq, head_dim), jnp.float32),
            ],
        ),
        # B is a parallel axis (>=2 in practice) so v7x's second TensorCore
        # gets sharded work; the pair axis is a sequential reduction.
        compiler_params=pltpu.CompilerParams(
            dimension_semantics=("parallel", "arbitrary"),
            vmem_limit_bytes=_VMEM_LIMIT),
    )(qi_ids, ki_ids, q, k, v)


# -------------------------- Module forward (glue) ---------------------------

class GroupedQueryAttentionPallas:
    # TODO(synk): rotary embeddings, qk_ln/qk_gn, clip_qkv, attn dropout,
    # sliding window, temperature tuning and logit softcapping are disabled in
    # the reproduced default config and not implemented here.
    def __init__(self, d_model, n_heads, kv_n_heads, key, head_dim=None,
                 softmax_scale=None):
        assert n_heads % kv_n_heads == 0
        self.d_model = d_model
        self.n_heads = n_heads
        self.kv_n_heads = kv_n_heads
        self.head_dim = head_dim if head_dim is not None else d_model // n_heads
        # llmfoundry default: 1/sqrt(d_model/n_heads) (== 1/sqrt(head_dim) only
        # for the default head_dim).
        self.softmax_scale = (softmax_scale if softmax_scale is not None
                              else 1.0 / math.sqrt(d_model / n_heads))

        qkv_out = n_heads * self.head_dim + 2 * kv_n_heads * self.head_dim
        k1, k2, k3, k4 = jax.random.split(key, 4)
        bnd_qkv = 1.0 / math.sqrt(d_model)
        bnd_out = 1.0 / math.sqrt(n_heads * self.head_dim)
        # Weights stored in bf16 (MXU-native); biases kept in f32.
        self.wqkv = jax.random.uniform(k1, (d_model, qkv_out), jnp.float32,
                                       -bnd_qkv, bnd_qkv).astype(jnp.bfloat16)
        self.bqkv = jax.random.uniform(k2, (qkv_out,), jnp.float32,
                                       -bnd_qkv, bnd_qkv)
        self.wout = jax.random.uniform(k3, (n_heads * self.head_dim, d_model),
                                       jnp.float32, -bnd_out, bnd_out
                                       ).astype(jnp.bfloat16)
        self.bout = jax.random.uniform(k4, (d_model,), jnp.float32,
                                       -bnd_out, bnd_out)

    def __call__(self, x):
        H, KVH, hd = self.n_heads, self.kv_n_heads, self.head_dim
        xb = x.astype(jnp.bfloat16)

        # fused QKV projection (tiled bf16 Pallas matmul)
        qkv = linear(xb, self.wqkv, self.bqkv)
        q, k, v = jnp.split(qkv, [H * hd, H * hd + KVH * hd], axis=-1)

        # causal GQA flash attention on (B, S, features) slabs (no transposes)
        ctx = gqa_flash_attention(q, k, v, H, KVH, hd, self.softmax_scale)

        # output projection (tiled bf16 Pallas matmul)
        out = linear(ctx, self.wout, self.bout)
        # returns (out_proj(context), attn_weights=None, past_key_value=None)
        return out.astype(x.dtype), None, None


# ------------------------------- reference ---------------------------------

def reference_forward(x, mod: GroupedQueryAttentionPallas):
    B, S, _ = x.shape
    H, KVH, hd = mod.n_heads, mod.kv_n_heads, mod.head_dim
    group = H // KVH
    wqkv = mod.wqkv.astype(jnp.float32)
    wout = mod.wout.astype(jnp.float32)
    qkv = x @ wqkv + mod.bqkv
    q, k, v = jnp.split(qkv, [H * hd, H * hd + KVH * hd], axis=-1)
    q = q.reshape(B, S, H, hd)
    k = jnp.repeat(k.reshape(B, S, KVH, hd), group, axis=2)
    v = jnp.repeat(v.reshape(B, S, KVH, hd), group, axis=2)
    s = jnp.einsum('bqhd,bkhd->bhqk', q, k) * mod.softmax_scale
    mask = jnp.tril(jnp.ones((S, S), bool))
    s = jnp.where(mask[None, None], s, -jnp.inf)
    p = jax.nn.softmax(s, axis=-1)
    ctx = jnp.einsum('bhqk,bkhd->bqhd', p, v).reshape(B, S, H * hd)
    return ctx @ wout + mod.bout


# ---------------------------------- main ------------------------------------

if __name__ == "__main__":
    key = jax.random.PRNGKey(0)
    k_param, k_x = jax.random.split(key)

    B, S, d_model = 2, 8, 32
    n_heads, kv_n_heads = 4, 2  # head_dim = 8, GQA group = 2

    mod = GroupedQueryAttentionPallas(d_model, n_heads, kv_n_heads, k_param)
    x = jax.random.normal(k_x, (B, S, d_model), jnp.float32)

    out, attn_w, past_kv = mod(x)
    out = jax.block_until_ready(out)

    ref = jax.block_until_ready(reference_forward(x, mod))
    # tolerance covers bf16 activations/matmuls and the approx reciprocal
    np.testing.assert_allclose(np.asarray(out, dtype=np.float32),
                               np.asarray(ref, dtype=np.float32),
                               rtol=3e-2, atol=3e-2)

    print("KERNEL_OK")
</pallas_src>

<mosaic_0001>
module attributes {stable_mosaic.version = 11 : i64} {
  func.func @_linear_kernel(%arg0: i32, %arg1: i32, %arg2: i32, %arg3: memref<16x32xbf16, #tpu.memory_space<vmem>>, %arg4: memref<32x64xbf16, #tpu.memory_space<vmem>>, %arg5: memref<1x64xf32, #tpu.memory_space<vmem>>, %arg6: memref<16x64xbf16, #tpu.memory_space<vmem>>, %arg7: memref<16x64xf32, #tpu.memory_space<vmem>>) attributes {dimension_semantics = [#tpu.dimension_semantics<parallel>, #tpu.dimension_semantics<parallel>, #tpu.dimension_semantics<arbitrary>], iteration_bounds = array<i64: 1, 1, 1>, scalar_prefetch = 0 : i64, scratch_operands = 1 : i64, tpu.core_type = #tpu.core_type<tc>, window_params = [{transform_indices = @transform_0, window_bounds = array<i64: 16, 32>}, {transform_indices = @transform_1, window_bounds = array<i64: 32, 64>}, {transform_indices = @transform_2, window_bounds = array<i64: 1, 64>}, {transform_indices = @transform_3, window_bounds = array<i64: 16, 64>}]} {
    %c0_i32 = arith.constant 0 : i32
    %0 = arith.cmpi eq, %arg2, %c0_i32 : i32
    %1 = arith.extui %0 : i1 to i32
    %c0_i32_0 = arith.constant 0 : i32
    %2 = arith.cmpi ne, %1, %c0_i32_0 : i32
    scf.if %2 {
      %cst_10 = arith.constant 0.000000e+00 : f32
      %12 = vector.broadcast %cst_10 : f32 to vector<16x64xf32>
      %c0_11 = arith.constant 0 : index
      %c0_12 = arith.constant 0 : index
      %13 = vector.load %arg7[%c0_11, %c0_12] : memref<16x64xf32, #tpu.memory_space<vmem>>, vector<16x64xf32>
      tpu.vector_store %arg7[%c0_11, %c0_12], %12 {strides = array<i32>} : memref<16x64xf32, #tpu.memory_space<vmem>>, vector<16x64xf32>,
    } else {
    }
    %c0 = arith.constant 0 : index
    %c0_1 = arith.constant 0 : index
    %3 = vector.load %arg7[%c0, %c0_1] : memref<16x64xf32, #tpu.memory_space<vmem>>, vector<16x64xf32>
    %c0_2 = arith.constant 0 : index
    %c0_3 = arith.constant 0 : index
    %4 = vector.load %arg3[%c0_2, %c0_3] : memref<16x32xbf16, #tpu.memory_space<vmem>>, vector<16x32xbf16>
    %c0_4 = arith.constant 0 : index
    %c0_5 = arith.constant 0 : index
    %5 = vector.load %arg4[%c0_4, %c0_5] : memref<32x64xbf16, #tpu.memory_space<vmem>>, vector<32x64xbf16>
    %cst = arith.constant dense<0.000000e+00> : vector<16x64xf32>
    %6 = tpu.matmul %4, %5, %cst {dimension_numbers = #tpu.dot_dimension_numbers<[1], [0], [0], [1], [0, 0, 1, 1], [], []>} : vector<16x32xbf16>, vector<32x64xbf16>, vector<16x64xf32> -> vector<16x64xf32>
    %7 = arith.addf %3, %6 : vector<16x64xf32>
    %c0_6 = arith.constant 0 : index
    %c0_7 = arith.constant 0 : index
    %8 = vector.load %arg7[%c0_6, %c0_7] : memref<16x64xf32, #tpu.memory_space<vmem>>, vector<16x64xf32>
    tpu.vector_store %arg7[%c0_6, %c0_7], %7 {strides = array<i32>} : memref<16x64xf32, #tpu.memory_space<vmem>>, vector<16x64xf32>,
    %c0_i32_8 = arith.constant 0 : i32
    %9 = arith.cmpi eq, %arg2, %c0_i32_8 : i32
    %10 = arith.extui %9 : i1 to i32
    %c0_i32_9 = arith.constant 0 : i32
    %11 = arith.cmpi ne, %10, %c0_i32_9 : i32
    scf.if %11 {
      %c0_10 = arith.constant 0 : index
      %c0_11 = arith.constant 0 : index
      %12 = vector.load %arg7[%c0_10, %c0_11] : memref<16x64xf32, #tpu.memory_space<vmem>>, vector<16x64xf32>
      %c0_12 = arith.constant 0 : index
      %c0_13 = arith.constant 0 : index
      %13 = vector.load %arg5[%c0_12, %c0_13] : memref<1x64xf32, #tpu.memory_space<vmem>>, vector<1x64xf32>
      %14 = vector.broadcast %13 : vector<1x64xf32> to vector<16x64xf32>
      %15 = arith.addf %12, %14 : vector<16x64xf32>
      %16 = arith.truncf %15 : vector<16x64xf32> to vector<16x64xbf16>
      %c0_14 = arith.constant 0 : index
      %c0_15 = arith.constant 0 : index
      %17 = vector.load %arg6[%c0_14, %c0_15] : memref<16x64xbf16, #tpu.memory_space<vmem>>, vector<16x64xbf16>
      tpu.vector_store %arg6[%c0_14, %c0_15], %16 {strides = array<i32>} : memref<16x64xbf16, #tpu.memory_space<vmem>>, vector<16x64xbf16>,
    } else {
    }
    return
  }
  func.func @transform_0(%arg0: i32, %arg1: i32, %arg2: i32) -> (i32, i32) {
    %c0_i32 = arith.constant 0 : i32
    return %arg0, %arg2 : i32, i32
  }
  func.func @transform_1(%arg0: i32, %arg1: i32, %arg2: i32) -> (i32, i32) {
    %c0_i32 = arith.constant 0 : i32
    return %arg2, %arg1 : i32, i32
  }
  func.func @transform_2(%arg0: i32, %arg1: i32, %arg2: i32) -> (i32, i32) {
    %c0_i32 = arith.constant 0 : i32
    %c0_i32_0 = arith.constant 0 : i32
    return %c0_i32, %arg1 : i32, i32
  }
  func.func @transform_3(%arg0: i32, %arg1: i32, %arg2: i32) -> (i32, i32) {
    %c0_i32 = arith.constant 0 : i32
    return %arg0, %arg1 : i32, i32
  }
}

</mosaic_0001>

<llo_original>
// kernel: tpu_custom_call.1
$region0: #{tpu_custom_call.1}
  #allocation0 [shape = 'u32[]', space=smem, size = 0x4, offset = 0x4, fixed_abs, tag = 'smem constant byte address 0x4 - core index']
  #allocation1 [shape = 'u32[72,128]{1,0:T(1,128)}', space=vmem, size = 0x9000, scoped, tag = 'internal scratch']
  #allocation2 [shape = 'f32[16,64]{1,0:T(8,128)}', space=vmem, size = 0x2000, scoped, tag = 'scratch operand']
  %s0 = inlined_call_operand.hbm [shape: bf16[16,32], index: 0, kind: input, shape index: {}]
  %s1 = inlined_call_operand.hbm [shape: bf16[32,64], index: 1, kind: input, shape index: {}]
  %s2 = inlined_call_operand.vmem [shape: f32[1,64], index: 2, kind: input, shape index: {}]
  %s3 = inlined_call_operand.hbm [shape: bf16[16,64], index: 3, kind: output, shape index: {}]
  %s4 = sld [smem:[#allocation0]]
  $region38: #{tpu_custom_call.1} parent=0
    _
  %s6 = ssub.s32 1, %s4
  %s7 = scalar_select 0, %s6, %s4
  $region1: #{tpu_custom_call.1} parent=0
    #allocation3 [shape = 'u8[4096]{0}', space=vmem, size = 0x1000, scoped, tag = 'input window, operand 0, single buffered']
    #allocation4 [shape = 's32[1]{0}', space=sflag, size = 0x4, scoped, tag = 'scoped memory for tpu_custom_call.1']
    #allocation5 [shape = 's32[1]{0}', space=sflag, size = 0x4, scoped, tag = 'scoped memory for tpu_custom_call.1']
    #allocation6 [shape = 'u8[8192]{0}', space=vmem, size = 0x2000, scoped, tag = 'input window, operand 1, single buffered']
    #allocation7 [shape = 's32[1]{0}', space=sflag, size = 0x4, scoped, tag = 'scoped memory for tpu_custom_call.1']
    #allocation8 [shape = 'u8[4096]{0}', space=vmem, size = 0x1000, scoped, tag = 'output window, operand 0, single buffered']
    %8 = vsyncpa [#allocation4], 0
    %9 = vsyncpa [#allocation7], 0
    %10 = vsyncpa [#allocation5], 0
    // Predicated region
    $region2: #{tpu_custom_call.1} parent=1 // pred_check
      _
    $region3: #{tpu_custom_call.1} parent=1 // pred_check_branch
      %12 = sbr.rel (0) target = $region5
    $region4: #{tpu_custom_call.1} parent=1 // pred_region
      %14 = vsyncadd [#allocation4], 0
      %s15 = sshll.u32 %s0, 4
      %s16 = int_to_ptr.hbm [resolvable:$true] %s15
      %s17 = sshll.u32 [#allocation3], 4
      %s18 = int_to_ptr.vmem [resolvable:$true] %s17
      %23 = dma.hbm_to_vmem [thread:$0]  %s16, 128, %s18, [#allocation4], 64, 64, 4
    $region5: #{tpu_custom_call.1} parent=1 // pred_fallthru
      _
    // Predicated region
    $region6: #{tpu_custom_call.1} parent=1 // pred_check
      _
    $region7: #{tpu_custom_call.1} parent=1 // pred_check_branch
      %25 = sbr.rel (0) target = $region9
    $region8: #{tpu_custom_call.1} parent=1 // pred_region
      %27 = vsyncadd [#allocation7], 0
      %s28 = sshll.u32 %s1, 4
      %s29 = int_to_ptr.hbm [resolvable:$true] %s28
      %s30 = sshll.u32 [#allocation6], 4
      %s31 = int_to_ptr.vmem [resolvable:$true] %s30
      %36 = dma.hbm_to_vmem [thread:$0]  %s29, 256, %s31, [#allocation7], 64, 64, 4
    $region9: #{tpu_custom_call.1} parent=1 // pred_fallthru
      _
    // Predicated region
    $region10: #{tpu_custom_call.1} parent=1 // pred_check
      _
    $region11: #{tpu_custom_call.1} parent=1 // pred_check_branch
      %38 = sbr.rel (0) target = $region13
    $region12: #{tpu_custom_call.1} parent=1 // pred_region
      _
    $region13: #{tpu_custom_call.1} parent=1 // pred_fallthru
      _
    // Predicated region
    $region14: #{tpu_custom_call.1} parent=1 // pred_check
      _
    $region15: #{tpu_custom_call.1} parent=1 // pred_check_branch
      %40 = sbr.rel (0) target = $region17
    $region16: #{tpu_custom_call.1} parent=1 // pred_region
      %42 = dma.done [#allocation4], 128
    $region17: #{tpu_custom_call.1} parent=1 // pred_fallthru
      _
    // Predicated region
    $region18: #{tpu_custom_call.1} parent=1 // pred_check
      _
    $region19: #{tpu_custom_call.1} parent=1 // pred_check_branch
      %44 = sbr.rel (0) target = $region21
    $region20: #{tpu_custom_call.1} parent=1 // pred_region
      %46 = dma.done [#allocation7], 256
    $region21: #{tpu_custom_call.1} parent=1 // pred_fallthru
      _
    %p48 = scmp.eq.s32.totalorder 0, 0
    // Predicated region
    $region22: #{tpu_custom_call.1} parent=1 // pred_check
      %p49 = pneg %p48
    $region23: #{tpu_custom_call.1} parent=1 // pred_check_branch
      %51 = sbr.rel (%p49) target = $region25
    $region24: #{tpu_custom_call.1} parent=1 // pred_region
      %vm52 = vcmask 523264
      %53 = vst.msk [vmem:[#allocation2] sm:$0xff] %vm52, 0.0
      %54 = vst.msk [vmem:[#allocation2 + $0x8] sm:$0xff] %vm52, 0.0
    $region25: #{tpu_custom_call.1} parent=1 // pred_fallthru
      _
    %v55 = vld [vmem:[#allocation2] sm:$0xff]
    %v56 = vld [vmem:[#allocation2 + $0x8] sm:$0xff]
    %v57 = vld [vmem:[#allocation3] sm:$0xf]
    %v58 = vld [vmem:[#allocation3 + $0x4] sm:$0xf]
    %v59 = vld [vmem:[#allocation6] sm:$0xf]
    %v60 = vld [vmem:[#allocation6 + $0x4] sm:$0xf]
    %v61 = vld [vmem:[#allocation6 + $0x8] sm:$0xf]
    %v62 = vld [vmem:[#allocation6 + $0xc] sm:$0xf]
    %v65 = vunpack.c.l.b16 %v57
    %v66 = vunpack.c.l.b16 %v58
    %v67 = vpack.c.b16 %v66, %v65
    %v72 = vunpack.c.l.b16 %v59
    %v73 = vunpack.c.l.b16 %v60
    %v74 = vunpack.c.l.b16 %v61
    %v75 = vunpack.c.l.b16 %v62
    %v76 = vpack.c.b16 %v73, %v72
    %v77 = vpack.c.b16 %v75, %v74
    %vm80 = vcmask 261120
    %v82 = vsel %vm80, %v67, 0
    %84 = vmatpush.bf16.msra.mxu0 0
    %85 = vmatpush.bf16.msra.mxu0 0
    %86 = vmatpush.bf16.msra.mxu0 0
    %87 = vmatpush.bf16.msra.mxu0 0
    %88 = vmatpush.bf16.msra.mxu0 0
    %89 = vmatpush.bf16.msra.mxu0 0
    %90 = vmatpush.bf16.msra.mxu0 %v77
    %91 = vmatpush.bf16.msra.mxu0 %v76
    %92 = vmatmul.bf16.gmra.mxu0 %v82
    %v93 = vpop.f32.mrf.mxu0
    %v94 = vadd.f32 0.0, %v93
    %v95 = vpop.f32.mrf.mxu0
    %v96 = vadd.f32 0.0, %v95
    %97 = vdwg.mxu0
    %v98 = vadd.f32 %v55, %v94
    %v99 = vadd.f32 %v56, %v96
    %vm100 = vcmask 523264
    %101 = vst.msk [vmem:[#allocation2] sm:$0xff] %vm100, %v98
    %102 = vst.msk [vmem:[#allocation2 + $0x8] sm:$0xff] %vm100, %v99
    // Predicated region
    $region26: #{tpu_custom_call.1} parent=1 // pred_check
      %p103 = pneg %p48
    $region27: #{tpu_custom_call.1} parent=1 // pred_check_branch
      %105 = sbr.rel (%p103) target = $region29
    $region28: #{tpu_custom_call.1} parent=1 // pred_region
      %v106 = vld [vmem:[#allocation2] sm:$0xff]
      %v107 = vld [vmem:[#allocation2 + $0x8] sm:$0xff]
      %v108 = vld [vmem:[%s2] sm:$0x1]
      %v110 = vperm.slane %v108, 0
      %v112 = vadd.f32 %v106, %v110
      %v113 = vadd.f32 %v107, %v110
      %v114 = vpack.c.bf16 %v112, %v112
      %v115 = vpack.c.bf16 %v113, %v113
      %vm116 = vcmask 519168
      %117 = vst.msk [vmem:[#allocation8] sm:$0xf] %vm116, %v114
      %118 = vst.msk [vmem:[#allocation8 + $0x4] sm:$0xf] %vm116, %v115
    $region29: #{tpu_custom_call.1} parent=1 // pred_fallthru
      _
    // Predicated region
    $region30: #{tpu_custom_call.1} parent=1 // pred_check
      _
    $region31: #{tpu_custom_call.1} parent=1 // pred_check_branch
      %120 = sbr.rel (0) target = $region33
    $region32: #{tpu_custom_call.1} parent=1 // pred_region
      %122 = vsyncadd [#allocation5], 0
      %s123 = sshll.u32 [#allocation8], 4
      %s124 = int_to_ptr.vmem [resolvable:$true] %s123
      %s125 = sshll.u32 %s3, 4
      %s126 = int_to_ptr.hbm [resolvable:$true] %s125
      %131 = dma.vmem_to_hbm [thread:$0]  %s124, 128, %s126, [#allocation5], 64, 64, 4
    $region33: #{tpu_custom_call.1} parent=1 // pred_fallthru
      _
    // Predicated region
    $region34: #{tpu_custom_call.1} parent=1 // pred_check
      _
    $region35: #{tpu_custom_call.1} parent=1 // pred_check_branch
      %133 = sbr.rel (0) target = $region37
    $region36: #{tpu_custom_call.1} parent=1 // pred_region
      %135 = dma.done [#allocation5], 128
    $region37: #{tpu_custom_call.1} parent=1 // pred_fallthru
      _
    %136 = vsyncpa [#allocation4], 1
    %137 = vsyncpa [#allocation7], 1
    %138 = vsyncpa [#allocation5], 1

</llo_original>
